<compile_context>
chip_gen: v7x
topology: tpu7x:2x2x1
jax: 0.10.0
libtpu: 0.0.40
codegen_flags: <defaults>
</compile_context>

<pallas_src>
import jax
import jax.numpy as jnp
from jax.experimental import pallas as pl
from jax.experimental.pallas import tpu as pltpu


def _round_up(x: int, n: int) -> int:
    return (x + n - 1) // n * n


def _cdiv(a: int, b: int) -> int:
    return -(-a // b)


def _vmem_capacity_bytes() -> int:
    """Physical VMEM per core; conservative 64 MiB (v7x) fallback if unknown."""
    try:
        return int(pltpu.get_tpu_info().vmem_capacity_bytes)
    except Exception:
        return 64 * 1024 * 1024


# ---------------------------------------------------------------------------
# Kernels
# ---------------------------------------------------------------------------
def _ffn_resident_kernel(x_ref, w1_ref, b1_ref, w2_ref, b2_ref, o_ref):
    """Both weight matrices VMEM-resident; one row tile of x per grid step."""
    # linear1 (MXU, f32 accumulation) + bias + ReLU on the VPU.
    h = jnp.dot(x_ref[...], w1_ref[...], preferred_element_type=jnp.float32)
    h = jnp.maximum(h + b1_ref[...], 0.0)
    # TODO(synk): dropout is the identity in eval mode; a training-mode kernel
    # would mask `h` here using pltpu.prng_seed / pltpu.prng_random_bits.
    y = jnp.dot(h.astype(w2_ref.dtype), w2_ref[...],
                preferred_element_type=jnp.float32)
    o_ref[...] = (y + b2_ref[...]).astype(o_ref.dtype)


def _ffn_fftiled_kernel(x_ref, w1_ref, b1_ref, w2_ref, b2_ref, o_ref, acc_ref):
    """Fallback when weights do not fit VMEM: d_ff is a trailing reduction axis."""
    ff = pl.program_id(1)

    @pl.when(ff == 0)
    def _init():
        acc_ref[...] = jnp.zeros_like(acc_ref)

    h = jnp.dot(x_ref[...], w1_ref[...], preferred_element_type=jnp.float32)
    h = jnp.maximum(h + b1_ref[...], 0.0)
    acc_ref[...] += jnp.dot(h.astype(w2_ref.dtype), w2_ref[...],
                            preferred_element_type=jnp.float32)

    @pl.when(ff == pl.num_programs(1) - 1)
    def _finalize():
        o_ref[...] = (acc_ref[...] + b2_ref[...]).astype(o_ref.dtype)


# ---------------------------------------------------------------------------
# Wrapper
# ---------------------------------------------------------------------------
@jax.jit
def positionwise_feed_forward(x, w1, b1, w2, b2):
    """x: (seq_len, batch, d_model); w1: (d_model, d_ff); w2: (d_ff, d_model)."""
    seq_len, batch, d_model = x.shape
    d_ff = w1.shape[1]
    m = seq_len * batch

    itm = x.dtype.itemsize
    out_itm = itm
    w1_itm = w1.dtype.itemsize
    w2_itm = w2.dtype.itemsize
    sublane = max(8, 32 // itm)              # 8 for f32, 16 for bf16, 32 for int8
    d_model_p = _round_up(d_model, 128)      # lane-dense last dims

    vmem_cap = _vmem_capacity_bytes()
    budget = vmem_cap - 8 * 1024 * 1024      # headroom for compiler scratch

    # Activations: only pad the lane (d_model) dim when required; the M axis is
    # left ragged (grid = cdiv(m, tm)) so no full activation pad copy happens.
    x2d = x.reshape(m, d_model)
    if d_model_p != d_model:
        x2d = jnp.pad(x2d, ((0, 0), (0, d_model_p - d_model)))

    def pad2d(a, r, c):
        pr, pc = r - a.shape[0], c - a.shape[1]
        return jnp.pad(a, ((0, pr), (0, pc))) if (pr or pc) else a

    # TODO(synk): numerics permitting, cast x/w1/w2 to bfloat16 here (keeping
    # f32 accumulation) for 2-4x MXU throughput; kept in the input dtype so the
    # result matches the f32 PyTorch reference bit-for-bit within 1e-5.

    # ------------------ preferred path: weights VMEM-resident ------------------
    d_ff_full = _round_up(d_ff, 128)
    # Worst-case assume Pallas double-buffers even constant-index operands.
    w_bytes = (d_model_p * d_ff_full * w1_itm
               + d_ff_full * d_model_p * w2_itm
               + 8 * d_ff_full * b1.dtype.itemsize
               + 8 * d_model_p * b2.dtype.itemsize)

    def resident_foot(tm):
        return (2 * tm * d_model_p * itm        # x tiles (double-buffered)
                + 2 * tm * d_model_p * out_itm  # out tiles
                + 2 * w_bytes                   # resident weights / biases
                + tm * d_ff_full * 4            # materialized h intermediate (f32)
                + tm * d_model_p * 4)           # second-dot result (f32)

    cap_tm = _round_up(m, sublane)
    cands = [t for t in (1024, 512, 256, 128) if t <= cap_tm] or [cap_tm]
    fitting = [t for t in cands if resident_foot(t) <= budget]

    if fitting:
        tm = fitting[0]
        n_tiles = _cdiv(m, tm)
        # Prefer an even row-tile count so v7x's two TensorCores split evenly.
        if n_tiles > 1 and n_tiles % 2 == 1:
            for t in fitting[1:]:
                if _cdiv(m, t) % 2 == 0:
                    tm = t
                    break
        n_tiles = _cdiv(m, tm)
        foot = resident_foot(tm)

        w1_p = pad2d(w1, d_model_p, d_ff_full)
        b1_p = pad2d(b1.reshape(1, d_ff), 1, d_ff_full)
        w2_p = pad2d(w2, d_ff_full, d_model_p)
        b2_p = pad2d(b2.reshape(1, d_model), 1, d_model_p)

        vmem_limit = min(max(32 << 20, int(1.25 * foot)), vmem_cap - (8 << 20))

        cost = pl.CostEstimate(
            flops=4 * n_tiles * tm * d_model_p * d_ff_full,
            transcendentals=0,
            bytes_accessed=(x2d.size * itm
                            + w1_p.size * w1_itm
                            + b1_p.size * b1.dtype.itemsize
                            + w2_p.size * w2_itm
                            + b2_p.size * b2.dtype.itemsize
                            + m * d_model_p * out_itm),
        )

        out_p = pl.pallas_call(
            _ffn_resident_kernel,
            out_shape=jax.ShapeDtypeStruct((m, d_model_p), x.dtype),
            grid_spec=pltpu.PrefetchScalarGridSpec(
                num_scalar_prefetch=0,
                grid=(n_tiles,),
                in_specs=[
                    pl.BlockSpec((tm, d_model_p), lambda i: (i, 0)),         # x tile
                    pl.BlockSpec((d_model_p, d_ff_full), lambda i: (0, 0)),  # w1 resident
                    pl.BlockSpec((1, d_ff_full), lambda i: (0, 0)),          # b1 resident
                    pl.BlockSpec((d_ff_full, d_model_p), lambda i: (0, 0)),  # w2 resident
                    pl.BlockSpec((1, d_model_p), lambda i: (0, 0)),          # b2 resident
                ],
                out_specs=pl.BlockSpec((tm, d_model_p), lambda i: (i, 0)),
            ),
            compiler_params=pltpu.CompilerParams(
                dimension_semantics=("parallel",),
                vmem_limit_bytes=vmem_limit,
            ),
            cost_estimate=cost,
        )(x2d, w1_p, b1_p, w2_p, b2_p)

    else:
        # -------- fallback: weights too large; tile d_ff as reduction axis --------
        pick = None
        for tm_c in (1024, 512, 256, 128):
            for tf_c in (1024, 512, 256):
                foot = (4 * tm_c * d_model_p * itm            # x + out tiles (2-buf)
                        + 2 * d_model_p * tf_c * w1_itm       # w1 slab
                        + 2 * tf_c * d_model_p * w2_itm       # w2 slab
                        + 2 * 8 * tf_c * b1.dtype.itemsize
                        + 2 * 8 * d_model_p * b2.dtype.itemsize
                        + tm_c * d_model_p * 4                # f32 accumulator
                        + tm_c * tf_c * 4                     # h intermediate
                        + tm_c * d_model_p * 4)               # dot result before +=
                if foot <= budget:
                    pick = (tm_c, tf_c, foot)
                    break
            if pick:
                break
        if pick is None:
            pick = (128, 256, budget)
        tm, tf, foot = pick
        tm = min(tm, cap_tm)

        d_ff_p = _round_up(d_ff, tf)
        w1_p = pad2d(w1, d_model_p, d_ff_p)
        b1_p = pad2d(b1.reshape(1, d_ff), 1, d_ff_p)
        w2_p = pad2d(w2, d_ff_p, d_model_p)
        b2_p = pad2d(b2.reshape(1, d_model), 1, d_model_p)

        n_m = _cdiv(m, tm)
        n_f = d_ff_p // tf
        vmem_limit = min(max(32 << 20, int(1.25 * foot)), vmem_cap - (8 << 20))

        cost = pl.CostEstimate(
            flops=4 * n_m * tm * d_model_p * d_ff_p,
            transcendentals=0,
            bytes_accessed=(x2d.size * itm
                            + n_m * (w1_p.size * w1_itm + w2_p.size * w2_itm)
                            + b1_p.size * b1.dtype.itemsize
                            + b2_p.size * b2.dtype.itemsize
                            + m * d_model_p * out_itm),
        )

        out_p = pl.pallas_call(
            _ffn_fftiled_kernel,
            out_shape=jax.ShapeDtypeStruct((m, d_model_p), x.dtype),
            grid_spec=pltpu.PrefetchScalarGridSpec(
                num_scalar_prefetch=0,
                grid=(n_m, n_f),
                in_specs=[
                    pl.BlockSpec((tm, d_model_p), lambda i, f: (i, 0)),   # x tile
                    pl.BlockSpec((d_model_p, tf), lambda i, f: (0, f)),   # w1 slab
                    pl.BlockSpec((1, tf), lambda i, f: (0, f)),           # b1 slab
                    pl.BlockSpec((tf, d_model_p), lambda i, f: (f, 0)),   # w2 slab
                    pl.BlockSpec((1, d_model_p), lambda i, f: (0, 0)),    # b2
                ],
                out_specs=pl.BlockSpec((tm, d_model_p), lambda i, f: (i, 0)),
                scratch_shapes=[pltpu.VMEM((tm, d_model_p), jnp.float32)],
            ),
            compiler_params=pltpu.CompilerParams(
                dimension_semantics=("parallel", "arbitrary"),
                vmem_limit_bytes=vmem_limit,
            ),
            cost_estimate=cost,
        )(x2d, w1_p, b1_p, w2_p, b2_p)

    out = out_p[:, :d_model] if d_model_p != d_model else out_p
    return out.reshape(seq_len, batch, d_model)


def _reference(x, w1, b1, w2, b2):
    h = jnp.maximum(jnp.dot(x, w1) + b1, 0.0)
    return jnp.dot(h, w2) + b2


if __name__ == "__main__":
    seq_len, batch, d_model, d_ff = 8, 2, 32, 64

    key = jax.random.PRNGKey(0)
    kx, k1, k2, k3, k4 = jax.random.split(key, 5)

    x = jax.random.normal(kx, (seq_len, batch, d_model), dtype=jnp.float32)

    # nn.Linear(d_model, d_ff): weight (d_ff, d_model), bias (d_ff,)
    # Weights are pre-transposed so the kernel computes x @ W^T directly.
    lim1 = 1.0 / jnp.sqrt(d_model)
    w1 = jax.random.uniform(k1, (d_model, d_ff), minval=-lim1, maxval=lim1,
                            dtype=jnp.float32)
    b1 = jax.random.uniform(k2, (d_ff,), minval=-lim1, maxval=lim1,
                            dtype=jnp.float32)
    lim2 = 1.0 / jnp.sqrt(d_ff)
    w2 = jax.random.uniform(k3, (d_ff, d_model), minval=-lim2, maxval=lim2,
                            dtype=jnp.float32)
    b2 = jax.random.uniform(k4, (d_model,), minval=-lim2, maxval=lim2,
                            dtype=jnp.float32)

    out = positionwise_feed_forward(x, w1, b1, w2, b2)
    out = jax.block_until_ready(out)

    ref = _reference(x, w1, b1, w2, b2)
    assert out.shape == (seq_len, batch, d_model)
    assert jnp.allclose(out, ref, atol=1e-5, rtol=1e-5), "mismatch vs reference"

    print("KERNEL_OK")
</pallas_src>

<mosaic_0001>
module attributes {stable_mosaic.version = 11 : i64} {
  func.func @_ffn_resident_kernel(%arg0: i32, %arg1: memref<16x128xf32, #tpu.memory_space<vmem>>, %arg2: memref<128x128xf32, #tpu.memory_space<vmem>>, %arg3: memref<1x128xf32, #tpu.memory_space<vmem>>, %arg4: memref<128x128xf32, #tpu.memory_space<vmem>>, %arg5: memref<1x128xf32, #tpu.memory_space<vmem>>, %arg6: memref<16x128xf32, #tpu.memory_space<vmem>>) attributes {dimension_semantics = [#tpu.dimension_semantics<parallel>], iteration_bounds = array<i64: 1>, scalar_prefetch = 0 : i64, scratch_operands = 0 : i64, tpu.core_type = #tpu.core_type<tc>, window_params = [{transform_indices = @transform_0, window_bounds = array<i64: 16, 128>}, {pipeline_mode = #tpu.pipeline_mode<synchronous>, transform_indices = @transform_1, window_bounds = array<i64: 128, 128>}, {pipeline_mode = #tpu.pipeline_mode<synchronous>, transform_indices = @transform_2, window_bounds = array<i64: 1, 128>}, {pipeline_mode = #tpu.pipeline_mode<synchronous>, transform_indices = @transform_3, window_bounds = array<i64: 128, 128>}, {pipeline_mode = #tpu.pipeline_mode<synchronous>, transform_indices = @transform_4, window_bounds = array<i64: 1, 128>}, {transform_indices = @transform_5, window_bounds = array<i64: 16, 128>}]} {
    %c0 = arith.constant 0 : index
    %c0_0 = arith.constant 0 : index
    %0 = vector.load %arg1[%c0, %c0_0] : memref<16x128xf32, #tpu.memory_space<vmem>>, vector<16x128xf32>
    %c0_1 = arith.constant 0 : index
    %c0_2 = arith.constant 0 : index
    %1 = vector.load %arg2[%c0_1, %c0_2] : memref<128x128xf32, #tpu.memory_space<vmem>>, vector<128x128xf32>
    %cst = arith.constant dense<0.000000e+00> : vector<16x128xf32>
    %2 = tpu.matmul %0, %1, %cst {dimension_numbers = #tpu.dot_dimension_numbers<[1], [0], [0], [1], [0, 0, 1, 1], [], []>} : vector<16x128xf32>, vector<128x128xf32>, vector<16x128xf32> -> vector<16x128xf32>
    %c0_3 = arith.constant 0 : index
    %c0_4 = arith.constant 0 : index
    %3 = vector.load %arg3[%c0_3, %c0_4] : memref<1x128xf32, #tpu.memory_space<vmem>>, vector<1x128xf32>
    %4 = vector.broadcast %3 : vector<1x128xf32> to vector<16x128xf32>
    %5 = arith.addf %2, %4 : vector<16x128xf32>
    %cst_5 = arith.constant 0.000000e+00 : f32
    %6 = vector.broadcast %cst_5 : f32 to vector<16x128xf32>
    %7 = arith.maximumf %5, %6 : vector<16x128xf32>
    %c0_6 = arith.constant 0 : index
    %c0_7 = arith.constant 0 : index
    %8 = vector.load %arg4[%c0_6, %c0_7] : memref<128x128xf32, #tpu.memory_space<vmem>>, vector<128x128xf32>
    %cst_8 = arith.constant dense<0.000000e+00> : vector<16x128xf32>
    %9 = tpu.matmul %7, %8, %cst_8 {dimension_numbers = #tpu.dot_dimension_numbers<[1], [0], [0], [1], [0, 0, 1, 1], [], []>} : vector<16x128xf32>, vector<128x128xf32>, vector<16x128xf32> -> vector<16x128xf32>
    %c0_9 = arith.constant 0 : index
    %c0_10 = arith.constant 0 : index
    %10 = vector.load %arg5[%c0_9, %c0_10] : memref<1x128xf32, #tpu.memory_space<vmem>>, vector<1x128xf32>
    %11 = vector.broadcast %10 : vector<1x128xf32> to vector<16x128xf32>
    %12 = arith.addf %9, %11 : vector<16x128xf32>
    %c0_11 = arith.constant 0 : index
    %c0_12 = arith.constant 0 : index
    %13 = vector.load %arg6[%c0_11, %c0_12] : memref<16x128xf32, #tpu.memory_space<vmem>>, vector<16x128xf32>
    tpu.vector_store %arg6[%c0_11, %c0_12], %12 {strides = array<i32>} : memref<16x128xf32, #tpu.memory_space<vmem>>, vector<16x128xf32>,
    return
  }
  func.func @transform_0(%arg0: i32) -> (i32, i32) {
    %c0_i32 = arith.constant 0 : i32
    %c0_i32_0 = arith.constant 0 : i32
    return %arg0, %c0_i32 : i32, i32
  }
  func.func @transform_1(%arg0: i32) -> (i32, i32) {
    %c0_i32 = arith.constant 0 : i32
    %c0_i32_0 = arith.constant 0 : i32
    %c0_i32_1 = arith.constant 0 : i32
    return %c0_i32, %c0_i32_0 : i32, i32
  }
  func.func @transform_2(%arg0: i32) -> (i32, i32) {
    %c0_i32 = arith.constant 0 : i32
    %c0_i32_0 = arith.constant 0 : i32
    %c0_i32_1 = arith.constant 0 : i32
    return %c0_i32, %c0_i32_0 : i32, i32
  }
  func.func @transform_3(%arg0: i32) -> (i32, i32) {
    %c0_i32 = arith.constant 0 : i32
    %c0_i32_0 = arith.constant 0 : i32
    %c0_i32_1 = arith.constant 0 : i32
    return %c0_i32, %c0_i32_0 : i32, i32
  }
  func.func @transform_4(%arg0: i32) -> (i32, i32) {
    %c0_i32 = arith.constant 0 : i32
    %c0_i32_0 = arith.constant 0 : i32
    %c0_i32_1 = arith.constant 0 : i32
    return %c0_i32, %c0_i32_0 : i32, i32
  }
  func.func @transform_5(%arg0: i32) -> (i32, i32) {
    %c0_i32 = arith.constant 0 : i32
    %c0_i32_0 = arith.constant 0 : i32
    return %arg0, %c0_i32 : i32, i32
  }
}

</mosaic_0001>

<llo_original>
// kernel: positionwise_feed_forward.1
$region0: #{positionwise_feed_forward.1}
  #allocation0 [shape = 'u32[]', space=smem, size = 0x4, offset = 0x4, fixed_abs, tag = 'smem constant byte address 0x4 - core index']
  #allocation1 [shape = 'u32[144,128]{1,0:T(1,128)}', space=vmem, size = 0x12000, scoped, tag = 'internal scratch']
  %s0 = inlined_call_operand.vmem [shape: f32[16,128], index: 0, kind: input, shape index: {}]
  %s1 = inlined_call_operand.vmem [shape: f32[128,128], index: 1, kind: input, shape index: {}]
  %s2 = inlined_call_operand.vmem [shape: f32[1,128], index: 2, kind: input, shape index: {}]
  %s3 = inlined_call_operand.vmem [shape: f32[128,128], index: 3, kind: input, shape index: {}]
  %s4 = inlined_call_operand.vmem [shape: f32[1,128], index: 4, kind: input, shape index: {}]
  %s5 = inlined_call_operand.hbm [shape: f32[16,128], index: 5, kind: output, shape index: {}]
  %s6 = sld [smem:[#allocation0]]
  $region30: #{positionwise_feed_forward.1} parent=0
    _
  %s8 = ssub.s32 1, %s6
  %s9 = scalar_select 0, %s8, %s6
  $region1: #{positionwise_feed_forward.1} parent=0
    #allocation2 [shape = 'u8[8192]{0}', space=vmem, size = 0x2000, scoped, tag = 'output window, operand 0, single buffered']
    #allocation3 [shape = 's32[1]{0}', space=sflag, size = 0x4, scoped, tag = 'scoped memory for positionwise_feed_forward.1']
    %10 = vsyncpa [#allocation3], 0
    // Predicated region
    $region2: #{positionwise_feed_forward.1} parent=1 // pred_check
      _
    $region3: #{positionwise_feed_forward.1} parent=1 // pred_check_branch
      %12 = sbr.rel (0) target = $region5
    $region4: #{positionwise_feed_forward.1} parent=1 // pred_region
      _
    $region5: #{positionwise_feed_forward.1} parent=1 // pred_fallthru
      _
    // Predicated region
    $region6: #{positionwise_feed_forward.1} parent=1 // pred_check
      _
    $region7: #{positionwise_feed_forward.1} parent=1 // pred_check_branch
      %14 = sbr.rel (0) target = $region9
    $region8: #{positionwise_feed_forward.1} parent=1 // pred_region
      _
    $region9: #{positionwise_feed_forward.1} parent=1 // pred_fallthru
      _
    // Predicated region
    $region10: #{positionwise_feed_forward.1} parent=1 // pred_check
      _
    $region11: #{positionwise_feed_forward.1} parent=1 // pred_check_branch
      %16 = sbr.rel (0) target = $region13
    $region12: #{positionwise_feed_forward.1} parent=1 // pred_region
      _
    $region13: #{positionwise_feed_forward.1} parent=1 // pred_fallthru
      _
    // Predicated region
    $region14: #{positionwise_feed_forward.1} parent=1 // pred_check
      _
    $region15: #{positionwise_feed_forward.1} parent=1 // pred_check_branch
      %18 = sbr.rel (0) target = $region17
    $region16: #{positionwise_feed_forward.1} parent=1 // pred_region
      _
    $region17: #{positionwise_feed_forward.1} parent=1 // pred_fallthru
      _
    // Predicated region
    $region18: #{positionwise_feed_forward.1} parent=1 // pred_check
      _
    $region19: #{positionwise_feed_forward.1} parent=1 // pred_check_branch
      %20 = sbr.rel (0) target = $region21
    $region20: #{positionwise_feed_forward.1} parent=1 // pred_region
      _
    $region21: #{positionwise_feed_forward.1} parent=1 // pred_fallthru
      _
    %v21 = vld [vmem:[%s0] sm:$0xff]
    %v22 = vld [vmem:[%s0 + $0x8] sm:$0xff]
    %v23 = vld [vmem:[%s1] sm:$0xff]
    %v24 = vld [vmem:[%s1 + $0x8] sm:$0xff]
    %v25 = vld [vmem:[%s1 + $0x10] sm:$0xff]
    %v26 = vld [vmem:[%s1 + $0x18] sm:$0xff]
    %v27 = vld [vmem:[%s1 + $0x20] sm:$0xff]
    %v28 = vld [vmem:[%s1 + $0x28] sm:$0xff]
    %v29 = vld [vmem:[%s1 + $0x30] sm:$0xff]
    %v30 = vld [vmem:[%s1 + $0x38] sm:$0xff]
    %v31 = vld [vmem:[%s1 + $0x40] sm:$0xff]
    %v32 = vld [vmem:[%s1 + $0x48] sm:$0xff]
    %v33 = vld [vmem:[%s1 + $0x50] sm:$0xff]
    %v34 = vld [vmem:[%s1 + $0x58] sm:$0xff]
    %v35 = vld [vmem:[%s1 + $0x60] sm:$0xff]
    %v36 = vld [vmem:[%s1 + $0x68] sm:$0xff]
    %v37 = vld [vmem:[%s1 + $0x70] sm:$0xff]
    %v38 = vld [vmem:[%s1 + $0x78] sm:$0xff]
    %v39 = vld [vmem:[%s2] sm:$0x1]
    %v41 = vlaneseq
    %v42 = vshrl.u32 %v41, 7
    %v43 = vsub.s32 0, %v42
    %v44 = vrot.slane %v39, %v43
    %46 = vmatprep.subr.mxu0 0.0
    %47 = vmatpush1.msra.mxu0 %v23
    %48 = vmatprep.subr.mxu0 0.0
    %49 = vmatpush1.msra.mxu0 %v24
    %50 = vmatprep.subr.mxu0 0.0
    %51 = vmatpush1.msra.mxu0 %v25
    %52 = vmatprep.subr.mxu0 0.0
    %53 = vmatpush1.msra.mxu0 %v26
    %54 = vmatprep.subr.mxu0 0.0
    %55 = vmatpush1.msra.mxu0 %v27
    %56 = vmatprep.subr.mxu0 0.0
    %57 = vmatpush1.msra.mxu0 %v28
    %58 = vmatprep.subr.mxu0 0.0
    %59 = vmatpush1.msra.mxu0 %v29
    %60 = vmatprep.subr.mxu0 0.0
    %61 = vmatpush1.msra.mxu0 %v30
    %62 = vmatprep.subr.mxu0 0.0
    %63 = vmatpush1.msra.mxu0 %v31
    %64 = vmatprep.subr.mxu0 0.0
    %65 = vmatpush1.msra.mxu0 %v32
    %66 = vmatprep.subr.mxu0 0.0
    %67 = vmatpush1.msra.mxu0 %v33
    %68 = vmatprep.subr.mxu0 0.0
    %69 = vmatpush1.msra.mxu0 %v34
    %70 = vmatprep.subr.mxu0 0.0
    %71 = vmatpush1.msra.mxu0 %v35
    %72 = vmatprep.subr.mxu0 0.0
    %73 = vmatpush1.msra.mxu0 %v36
    %74 = vmatprep.subr.mxu0 0.0
    %75 = vmatpush1.msra.mxu0 %v37
    %76 = vmatprep.subr.mxu0 0.0
    %77 = vmatpush1.msra.mxu0 %v38
    %78 = vmatprep.subr.mxu0 0.0
    %79 = vmatpush1.msra.mxu0 0.0
    %80 = vmatprep.subr.mxu0 0.0
    %81 = vmatpush1.msra.mxu0 0.0
    %82 = vmatprep.subr.mxu0 0.0
    %83 = vmatpush1.msra.mxu0 0.0
    %84 = vmatprep.subr.mxu0 0.0
    %85 = vmatpush1.msra.mxu0 0.0
    %86 = vmatprep.subr.mxu0 0.0
    %87 = vmatpush1.msra.mxu0 0.0
    %88 = vmatprep.subr.mxu0 0.0
    %89 = vmatpush1.msra.mxu0 0.0
    %90 = vmatprep.subr.mxu0 0.0
    %91 = vmatpush1.msra.mxu0 0.0
    %92 = vmatprep.subr.mxu0 0.0
    %93 = vmatpush1.msra.mxu0 0.0
    %94 = vmatprep.subr.mxu0 0.0
    %95 = vmatpush1.msra.mxu0 0.0
    %96 = vmatprep.subr.mxu0 0.0
    %97 = vmatpush1.msra.mxu0 0.0
    %98 = vmatprep.subr.mxu0 0.0
    %99 = vmatpush1.msra.mxu0 0.0
    %100 = vmatprep.subr.mxu0 0.0
    %101 = vmatpush1.msra.mxu0 0.0
    %102 = vmatprep.subr.mxu0 0.0
    %103 = vmatpush1.msra.mxu0 0.0
    %104 = vmatprep.subr.mxu0 0.0
    %105 = vmatpush1.msra.mxu0 0.0
    %106 = vmatprep.subr.mxu0 0.0
    %107 = vmatpush1.msra.mxu0 0.0
    %108 = vmatprep.subr.mxu0 0.0
    %109 = vmatpush1.msra.mxu0 0.0
    %110 = vmatprep.mubr.f32.mxu0 0.0
    %111 = vmatmul.mubr.f32.gmra.mrb[0].mxu0 %v21
    %v112 = vpop.f32.mrb[0].mxu0
    %v113 = vadd.f32 %v44, %v112
    %v114 = vpop.f32.mrb[0].mxu0
    %115 = vmatprep.mubr.f32.mxu0 0.0
    %116 = vmatmul.mubr.f32.gmra.mrb[0].mxu0 %v22
    %v117 = vpop.f32.mrb[0].mxu0
    %v118 = vadd.f32 %v44, %v117
    %v119 = vpop.f32.mrb[0].mxu0
    %120 = vdwg.mxu0
    %v121 = vmax.f32 %v113, 0.0
    %v122 = vmax.f32 %v118, 0.0
    %v123 = vld [vmem:[%s3] sm:$0xff]
    %v124 = vld [vmem:[%s3 + $0x8] sm:$0xff]
    %v125 = vld [vmem:[%s3 + $0x10] sm:$0xff]
    %v126 = vld [vmem:[%s3 + $0x18] sm:$0xff]
    %v127 = vld [vmem:[%s3 + $0x20] sm:$0xff]
    %v128 = vld [vmem:[%s3 + $0x28] sm:$0xff]
    %v129 = vld [vmem:[%s3 + $0x30] sm:$0xff]
    %v130 = vld [vmem:[%s3 + $0x38] sm:$0xff]
    %v131 = vld [vmem:[%s3 + $0x40] sm:$0xff]
    %v132 = vld [vmem:[%s3 + $0x48] sm:$0xff]
    %v133 = vld [vmem:[%s3 + $0x50] sm:$0xff]
    %v134 = vld [vmem:[%s3 + $0x58] sm:$0xff]
    %v135 = vld [vmem:[%s3 + $0x60] sm:$0xff]
    %v136 = vld [vmem:[%s3 + $0x68] sm:$0xff]
    %v137 = vld [vmem:[%s3 + $0x70] sm:$0xff]
    %v138 = vld [vmem:[%s3 + $0x78] sm:$0xff]
    %v139 = vld [vmem:[%s4] sm:$0x1]
    %v141 = vlaneseq
    %v142 = vshrl.u32 %v141, 7
    %v143 = vsub.s32 0, %v142
    %v144 = vrot.slane %v139, %v143
    %146 = vmatprep.subr.mxu0 0.0
    %147 = vmatpush1.msra.mxu0 %v123
    %148 = vmatprep.subr.mxu0 0.0
    %149 = vmatpush1.msra.mxu0 %v124
    %150 = vmatprep.subr.mxu0 0.0
    %151 = vmatpush1.msra.mxu0 %v125
    %152 = vmatprep.subr.mxu0 0.0
    %153 = vmatpush1.msra.mxu0 %v126
    %154 = vmatprep.subr.mxu0 0.0
    %155 = vmatpush1.msra.mxu0 %v127
    %156 = vmatprep.subr.mxu0 0.0
    %157 = vmatpush1.msra.mxu0 %v128
    %158 = vmatprep.subr.mxu0 0.0
    %159 = vmatpush1.msra.mxu0 %v129
    %160 = vmatprep.subr.mxu0 0.0
    %161 = vmatpush1.msra.mxu0 %v130
    %162 = vmatprep.subr.mxu0 0.0
    %163 = vmatpush1.msra.mxu0 %v131
    %164 = vmatprep.subr.mxu0 0.0
    %165 = vmatpush1.msra.mxu0 %v132
    %166 = vmatprep.subr.mxu0 0.0
    %167 = vmatpush1.msra.mxu0 %v133
    %168 = vmatprep.subr.mxu0 0.0
    %169 = vmatpush1.msra.mxu0 %v134
    %170 = vmatprep.subr.mxu0 0.0
    %171 = vmatpush1.msra.mxu0 %v135
    %172 = vmatprep.subr.mxu0 0.0
    %173 = vmatpush1.msra.mxu0 %v136
    %174 = vmatprep.subr.mxu0 0.0
    %175 = vmatpush1.msra.mxu0 %v137
    %176 = vmatprep.subr.mxu0 0.0
    %177 = vmatpush1.msra.mxu0 %v138
    %178 = vmatprep.subr.mxu0 0.0
    %179 = vmatpush1.msra.mxu0 0.0
    %180 = vmatprep.subr.mxu0 0.0
    %181 = vmatpush1.msra.mxu0 0.0
    %182 = vmatprep.subr.mxu0 0.0
    %183 = vmatpush1.msra.mxu0 0.0
    %184 = vmatprep.subr.mxu0 0.0
    %185 = vmatpush1.msra.mxu0 0.0
    %186 = vmatprep.subr.mxu0 0.0
    %187 = vmatpush1.msra.mxu0 0.0
    %188 = vmatprep.subr.mxu0 0.0
    %189 = vmatpush1.msra.mxu0 0.0
    %190 = vmatprep.subr.mxu0 0.0
    %191 = vmatpush1.msra.mxu0 0.0
    %192 = vmatprep.subr.mxu0 0.0
    %193 = vmatpush1.msra.mxu0 0.0
    %194 = vmatprep.subr.mxu0 0.0
    %195 = vmatpush1.msra.mxu0 0.0
    %196 = vmatprep.subr.mxu0 0.0
    %197 = vmatpush1.msra.mxu0 0.0
    %198 = vmatprep.subr.mxu0 0.0
    %199 = vmatpush1.msra.mxu0 0.0
    %200 = vmatprep.subr.mxu0 0.0
    %201 = vmatpush1.msra.mxu0 0.0
    %202 = vmatprep.subr.mxu0 0.0
    %203 = vmatpush1.msra.mxu0 0.0
    %204 = vmatprep.subr.mxu0 0.0
    %205 = vmatpush1.msra.mxu0 0.0
    %206 = vmatprep.subr.mxu0 0.0
    %207 = vmatpush1.msra.mxu0 0.0
    %208 = vmatprep.subr.mxu0 0.0
    %209 = vmatpush1.msra.mxu0 0.0
    %210 = vmatprep.mubr.f32.mxu0 0.0
    %211 = vmatmul.mubr.f32.gmra.mrb[0].mxu0 %v121
    %v212 = vpop.f32.mrb[0].mxu0
    %v213 = vadd.f32 %v144, %v212
    %v214 = vpop.f32.mrb[0].mxu0
    %215 = vmatprep.mubr.f32.mxu0 0.0
    %216 = vmatmul.mubr.f32.gmra.mrb[0].mxu0 %v122
    %v217 = vpop.f32.mrb[0].mxu0
    %v218 = vadd.f32 %v144, %v217
    %v219 = vpop.f32.mrb[0].mxu0
    %220 = vdwg.mxu0
    %221 = vst [vmem:[#allocation2] sm:$0xff] %v213
    %222 = vst [vmem:[#allocation2 + $0x8] sm:$0xff] %v218
    // Predicated region
    $region22: #{positionwise_feed_forward.1} parent=1 // pred_check
      _
    $region23: #{positionwise_feed_forward.1} parent=1 // pred_check_branch
      %224 = sbr.rel (0) target = $region25
    $region24: #{positionwise_feed_forward.1} parent=1 // pred_region
      %s226 = ssub.s32 256, 256
      %227 = vsyncadd [#allocation3], %s226
      %s228 = sshll.u32 [#allocation2], 4
      %s229 = int_to_ptr.vmem [resolvable:$true] %s228
      %234 = dma.vmem_to_hbm [thread:$0]  %s229, 256, %s5, [#allocation3], 128, 128, 8
    $region25: #{positionwise_feed_forward.1} parent=1 // pred_fallthru
      _
    // Predicated region
    $region26: #{positionwise_feed_forward.1} parent=1 // pred_check
      _
    $region27: #{positionwise_feed_forward.1} parent=1 // pred_check_branch
      %236 = sbr.rel (0) target = $region29
    $region28: #{positionwise_feed_forward.1} parent=1 // pred_region
      %237 = dma.done [#allocation3], 256
    $region29: #{positionwise_feed_forward.1} parent=1 // pred_fallthru
      _
    %238 = vsyncpa [#allocation3], 1

</llo_original>
